<compile_context>
chip_gen: v7x
topology: tpu7x:2x2x1
jax: 0.10.0
libtpu: 0.0.40
codegen_flags: <defaults>
</compile_context>

<pallas_src>
import functools

import jax
import jax.numpy as jnp
from jax.experimental import pallas as pl
from jax.experimental.pallas import tpu as pltpu

EMBEDDING_DIM = 16
HIDDEN_DIM = 64

PACK = 8                      # batch rows per lane-dense packed row (PACK * E == 128)
LANE = 128
DEFAULT_MAX_TILE_ROWS = 4096  # batch rows per grid step (keeps many grid steps)


def _round_up(n, m):
    return -(-n // m) * m


def _mlp_kernel(x_ref, w1_ref, b1_ref, w2_ref, b2_ref, o_ref):
    # In-kernel bf16 cast of the streamed f32 x tile (VPU slack; kernel is BW-bound).
    x_bf = x_ref[...].astype(jnp.bfloat16)
    # fc1 (packed block-diagonal): (Tp, 8D) bf16 @ (8D, 8H) bf16 -> f32 accum.
    h = jnp.dot(x_bf, w1_ref[...], preferred_element_type=jnp.float32)
    h = jnp.maximum(h + b1_ref[...], 0.0)            # bias + ReLU in f32 on the VPU
    # fc2 (packed block-diagonal) kept in f32: (Tp, 8H) f32 @ (8H, 128) f32 -> f32.
    o = jnp.dot(h, w2_ref[...], preferred_element_type=jnp.float32)
    o_ref[...] = (o + b2_ref[...]).astype(o_ref.dtype)


def pack_params(w1, b1, w2, b2):
    """Build the block-diagonal packed weights once (hoist out of the hot path).

    w1: (D, H), b1: (H,), w2: (H, E), b2: (E,).
    """
    E = w2.shape[1]
    assert PACK * E == LANE, "packing assumes embedding_dim == 16 (8*16 = 128 lanes)"
    eye_bf = jnp.eye(PACK, dtype=jnp.bfloat16)
    eye_f32 = jnp.eye(PACK, dtype=jnp.float32)
    w1bd = jnp.kron(eye_bf, w1.astype(jnp.bfloat16))        # (8D, 8H) bf16
    w2bd = jnp.kron(eye_f32, w2.astype(jnp.float32))        # (8H, 128) f32
    b1t = jnp.tile(b1.astype(jnp.float32), PACK).reshape(1, PACK * w1.shape[1])
    b2t = jnp.tile(b2.astype(jnp.float32), PACK).reshape(1, PACK * E)
    return w1bd, b1t, w2bd, b2t


def _pick_tile(Bpad, max_tile_rows):
    """Tile (in rows) that divides the 128-padded batch; prefer >= 8 grid steps."""
    n_lane_blocks = Bpad // LANE
    max_blocks = max(1, min(int(max_tile_rows), Bpad) // LANE)
    if n_lane_blocks > 1:
        desired_steps = min(8, n_lane_blocks)
        max_blocks = min(max_blocks, max(1, n_lane_blocks // desired_steps))
    blocks_per_tile = 1
    for d in range(max_blocks, 0, -1):
        if n_lane_blocks % d == 0:
            blocks_per_tile = d
            break
    return blocks_per_tile * LANE


def embedding_net_forward_packed(x, packed_params, *,
                                 max_tile_rows=DEFAULT_MAX_TILE_ROWS,
                                 out_dtype=jnp.bfloat16):
    """x: (B, D) float32.  packed_params: output of pack_params().

    Returns (B, E) `out_dtype`, matching relu(x @ w1 + b1) @ w2 + b2
    (fc1 inputs rounded to bf16, all accumulation in f32).
    """
    w1bd, b1t, w2bd, b2t = packed_params
    B, D = x.shape
    H = b1t.shape[1] // PACK
    E = b2t.shape[1] // PACK
    assert PACK * E == LANE

    # Pad only to a multiple of 128 rows (not to a multiple of the tile).
    Bpad = _round_up(B, LANE)
    tile_rows = _pick_tile(Bpad, max_tile_rows)
    assert Bpad % tile_rows == 0

    x32 = x.astype(jnp.float32)
    if Bpad != B:
        x32 = jnp.pad(x32, ((0, Bpad - B), (0, 0)))
    Bp = Bpad // PACK
    tile_p = tile_rows // PACK
    xp = x32.reshape(Bp, PACK * D)                                   # (B/8, 8D) f32

    # --- VMEM budget: double-buffered streamed tiles + resident weights +
    #     in-kernel intermediates (x bf16 copy, h f32, o f32). ---
    out_itemsize = jnp.dtype(out_dtype).itemsize
    x_tile_bytes = tile_p * PACK * D * 4
    out_tile_bytes = tile_p * LANE * out_itemsize
    weight_bytes = int(w1bd.size) * 2 + int(w2bd.size) * 4 + (int(b1t.size) + int(b2t.size)) * 4
    interm_bytes = tile_p * PACK * D * 2 + tile_p * PACK * H * 4 + tile_p * LANE * 4
    need = 2 * x_tile_bytes + 2 * out_tile_bytes + weight_bytes + interm_bytes + (4 << 20)
    try:
        vmem_cap = int(pltpu.get_tpu_info().vmem_capacity_bytes)
    except Exception:
        vmem_cap = 64 << 20  # conservative (v7x per-TC)
    vmem_limit = int(min(max(need, 16 << 20), int(0.75 * vmem_cap)))

    cost = pl.CostEstimate(
        flops=int(2 * Bpad * D * H + 2 * Bpad * H * E),
        transcendentals=0,
        bytes_accessed=int(xp.size * 4 + Bp * LANE * out_itemsize + weight_bytes),
    )

    grid = (Bp // tile_p,)
    out_packed = pl.pallas_call(
        _mlp_kernel,
        out_shape=jax.ShapeDtypeStruct((Bp, LANE), out_dtype),
        grid_spec=pltpu.PrefetchScalarGridSpec(
            num_scalar_prefetch=0,
            grid=grid,
            in_specs=[
                # streamed, lane-dense x tile (double-buffered by BlockSpec).
                pl.BlockSpec((tile_p, PACK * D), lambda i: (i, 0)),
                pl.BlockSpec((PACK * D, PACK * H), lambda i: (0, 0)),  # W1bd (resident, bf16)
                pl.BlockSpec((1, PACK * H), lambda i: (0, 0)),         # b1 (tiled, f32)
                pl.BlockSpec((PACK * H, PACK * E), lambda i: (0, 0)),  # W2bd (resident, f32)
                pl.BlockSpec((1, PACK * E), lambda i: (0, 0)),         # b2 (tiled, f32)
            ],
            out_specs=pl.BlockSpec((tile_p, LANE), lambda i: (i, 0)),
        ),
        compiler_params=pltpu.CompilerParams(
            dimension_semantics=("parallel",),
            vmem_limit_bytes=vmem_limit,
        ),
        cost_estimate=cost,
    )(xp, w1bd, b1t, w2bd, b2t)

    return out_packed.reshape(Bpad, E)[:B]


def embedding_net_forward(x, w1, b1, w2, b2, *,
                          max_tile_rows=DEFAULT_MAX_TILE_ROWS,
                          out_dtype=jnp.bfloat16):
    """Convenience wrapper that packs weights per call.

    For repeated calls with the same weights, call pack_params() once and use
    embedding_net_forward_packed() to keep the kron/tile packing off the hot path.
    """
    return embedding_net_forward_packed(
        x, pack_params(w1, b1, w2, b2),
        max_tile_rows=max_tile_rows, out_dtype=out_dtype)


def init_params(key, input_dim, hidden_dim=HIDDEN_DIM, embedding_dim=EMBEDDING_DIM):
    """Deterministic PyTorch-Linear-style init: U(-1/sqrt(fan_in), 1/sqrt(fan_in))."""
    k1, k2, k3, k4 = jax.random.split(key, 4)
    bound1 = 1.0 / jnp.sqrt(input_dim)
    bound2 = 1.0 / jnp.sqrt(hidden_dim)
    w1 = jax.random.uniform(k1, (input_dim, hidden_dim), jnp.float32, -bound1, bound1)
    b1 = jax.random.uniform(k2, (hidden_dim,), jnp.float32, -bound1, bound1)
    w2 = jax.random.uniform(k3, (hidden_dim, embedding_dim), jnp.float32, -bound2, bound2)
    b2 = jax.random.uniform(k4, (embedding_dim,), jnp.float32, -bound2, bound2)
    return w1, b1, w2, b2


if __name__ == "__main__":
    key = jax.random.PRNGKey(0)
    kx1, kx2, kp = jax.random.split(key, 3)

    # Small synthetic input_dim=32 (stand-in for the PCA feature table).
    D = 32
    w1, b1, w2, b2 = init_params(kp, D)
    packed = pack_params(w1, b1, w2, b2)   # hoisted: packed once, reused per call

    def reference(x):
        # Same math as the PyTorch forward, on the bf16-rounded fc1 inputs the
        # kernel sees (all accumulation in f32, fc2 in f32).
        xb = x.astype(jnp.bfloat16).astype(jnp.float32)
        w1b = w1.astype(jnp.bfloat16).astype(jnp.float32)
        return jnp.maximum(xb @ w1b + b1, 0.0) @ w2 + b2

    # Case 1: multi-step grid (B=512 rows, 128-row tiles -> grid=(4,)).
    x1 = jax.random.normal(kx1, (512, D), jnp.float32)
    out1 = jax.block_until_ready(
        embedding_net_forward_packed(x1, packed, max_tile_rows=128))
    assert out1.shape == (512, EMBEDDING_DIM)
    assert out1.dtype == jnp.bfloat16
    assert jnp.allclose(out1.astype(jnp.float32), reference(x1), atol=3e-2, rtol=3e-2)

    # Case 2: tiny batch B=8 (pad-to-128 path, single grid step), f32 output.
    x2 = jax.random.normal(kx2, (8, D), jnp.float32)
    out2 = jax.block_until_ready(
        embedding_net_forward_packed(x2, packed, out_dtype=jnp.float32))
    assert out2.shape == (8, EMBEDDING_DIM)
    assert jnp.allclose(out2, reference(x2), atol=2e-2, rtol=2e-2)

    # Case 3: awkward batch (B=1280 -> pads only to 1280, 10 grid steps of 128 rows),
    # exercising the divisor-based tile selection via the convenience wrapper.
    x3 = jax.random.normal(kx1, (1280, D), jnp.float32)
    out3 = jax.block_until_ready(embedding_net_forward(x3, w1, b1, w2, b2))
    assert out3.shape == (1280, EMBEDDING_DIM)
    assert jnp.allclose(out3.astype(jnp.float32), reference(x3), atol=3e-2, rtol=3e-2)

    print("KERNEL_OK")
</pallas_src>

<mosaic_0001>
module attributes {stable_mosaic.version = 11 : i64} {
  func.func @_mlp_kernel(%arg0: i32, %arg1: memref<16x256xf32, #tpu.memory_space<vmem>>, %arg2: memref<256x512xbf16, #tpu.memory_space<vmem>>, %arg3: memref<1x512xf32, #tpu.memory_space<vmem>>, %arg4: memref<512x128xf32, #tpu.memory_space<vmem>>, %arg5: memref<1x128xf32, #tpu.memory_space<vmem>>, %arg6: memref<16x128xbf16, #tpu.memory_space<vmem>>) attributes {dimension_semantics = [#tpu.dimension_semantics<parallel>], iteration_bounds = array<i64: 4>, scalar_prefetch = 0 : i64, scratch_operands = 0 : i64, tpu.core_type = #tpu.core_type<tc>, window_params = [{transform_indices = @transform_0, window_bounds = array<i64: 16, 256>}, {pipeline_mode = #tpu.pipeline_mode<synchronous>, transform_indices = @transform_1, window_bounds = array<i64: 256, 512>}, {pipeline_mode = #tpu.pipeline_mode<synchronous>, transform_indices = @transform_2, window_bounds = array<i64: 1, 512>}, {pipeline_mode = #tpu.pipeline_mode<synchronous>, transform_indices = @transform_3, window_bounds = array<i64: 512, 128>}, {pipeline_mode = #tpu.pipeline_mode<synchronous>, transform_indices = @transform_4, window_bounds = array<i64: 1, 128>}, {transform_indices = @transform_5, window_bounds = array<i64: 16, 128>}]} {
    %c0 = arith.constant 0 : index
    %c0_0 = arith.constant 0 : index
    %0 = vector.load %arg1[%c0, %c0_0] : memref<16x256xf32, #tpu.memory_space<vmem>>, vector<16x256xf32>
    %1 = arith.truncf %0 : vector<16x256xf32> to vector<16x256xbf16>
    %c0_1 = arith.constant 0 : index
    %c0_2 = arith.constant 0 : index
    %2 = vector.load %arg2[%c0_1, %c0_2] : memref<256x512xbf16, #tpu.memory_space<vmem>>, vector<256x512xbf16>
    %cst = arith.constant dense<0.000000e+00> : vector<16x512xf32>
    %3 = tpu.matmul %1, %2, %cst {dimension_numbers = #tpu.dot_dimension_numbers<[1], [0], [0], [1], [0, 0, 1, 1], [], []>} : vector<16x256xbf16>, vector<256x512xbf16>, vector<16x512xf32> -> vector<16x512xf32>
    %c0_3 = arith.constant 0 : index
    %c0_4 = arith.constant 0 : index
    %4 = vector.load %arg3[%c0_3, %c0_4] : memref<1x512xf32, #tpu.memory_space<vmem>>, vector<1x512xf32>
    %5 = vector.broadcast %4 : vector<1x512xf32> to vector<16x512xf32>
    %6 = arith.addf %3, %5 : vector<16x512xf32>
    %cst_5 = arith.constant 0.000000e+00 : f32
    %7 = vector.broadcast %cst_5 : f32 to vector<16x512xf32>
    %8 = arith.maximumf %6, %7 : vector<16x512xf32>
    %c0_6 = arith.constant 0 : index
    %c0_7 = arith.constant 0 : index
    %9 = vector.load %arg4[%c0_6, %c0_7] : memref<512x128xf32, #tpu.memory_space<vmem>>, vector<512x128xf32>
    %cst_8 = arith.constant dense<0.000000e+00> : vector<16x128xf32>
    %10 = tpu.matmul %8, %9, %cst_8 {dimension_numbers = #tpu.dot_dimension_numbers<[1], [0], [0], [1], [0, 0, 1, 1], [], []>} : vector<16x512xf32>, vector<512x128xf32>, vector<16x128xf32> -> vector<16x128xf32>
    %c0_9 = arith.constant 0 : index
    %c0_10 = arith.constant 0 : index
    %11 = vector.load %arg5[%c0_9, %c0_10] : memref<1x128xf32, #tpu.memory_space<vmem>>, vector<1x128xf32>
    %12 = vector.broadcast %11 : vector<1x128xf32> to vector<16x128xf32>
    %13 = arith.addf %10, %12 : vector<16x128xf32>
    %14 = arith.truncf %13 : vector<16x128xf32> to vector<16x128xbf16>
    %c0_11 = arith.constant 0 : index
    %c0_12 = arith.constant 0 : index
    %15 = vector.load %arg6[%c0_11, %c0_12] : memref<16x128xbf16, #tpu.memory_space<vmem>>, vector<16x128xbf16>
    tpu.vector_store %arg6[%c0_11, %c0_12], %14 {strides = array<i32>} : memref<16x128xbf16, #tpu.memory_space<vmem>>, vector<16x128xbf16>,
    return
  }
  func.func @transform_0(%arg0: i32) -> (i32, i32) {
    %c0_i32 = arith.constant 0 : i32
    %c0_i32_0 = arith.constant 0 : i32
    return %arg0, %c0_i32 : i32, i32
  }
  func.func @transform_1(%arg0: i32) -> (i32, i32) {
    %c0_i32 = arith.constant 0 : i32
    %c0_i32_0 = arith.constant 0 : i32
    %c0_i32_1 = arith.constant 0 : i32
    return %c0_i32, %c0_i32_0 : i32, i32
  }
  func.func @transform_2(%arg0: i32) -> (i32, i32) {
    %c0_i32 = arith.constant 0 : i32
    %c0_i32_0 = arith.constant 0 : i32
    %c0_i32_1 = arith.constant 0 : i32
    return %c0_i32, %c0_i32_0 : i32, i32
  }
  func.func @transform_3(%arg0: i32) -> (i32, i32) {
    %c0_i32 = arith.constant 0 : i32
    %c0_i32_0 = arith.constant 0 : i32
    %c0_i32_1 = arith.constant 0 : i32
    return %c0_i32, %c0_i32_0 : i32, i32
  }
  func.func @transform_4(%arg0: i32) -> (i32, i32) {
    %c0_i32 = arith.constant 0 : i32
    %c0_i32_0 = arith.constant 0 : i32
    %c0_i32_1 = arith.constant 0 : i32
    return %c0_i32, %c0_i32_0 : i32, i32
  }
  func.func @transform_5(%arg0: i32) -> (i32, i32) {
    %c0_i32 = arith.constant 0 : i32
    %c0_i32_0 = arith.constant 0 : i32
    return %arg0, %c0_i32 : i32, i32
  }
}

</mosaic_0001>

<llo_original>
// kernel: tpu_custom_call.1
$region0: #{tpu_custom_call.1}
  #allocation0 [shape = 'u32[]', space=smem, size = 0x4, offset = 0x4, fixed_abs, tag = 'smem constant byte address 0x4 - core index']
  #allocation1 [shape = 'u32[144,128]{1,0:T(1,128)}', space=vmem, size = 0x12000, scoped, tag = 'internal scratch']
  %s0 = inlined_call_operand.hbm [shape: f32[64,256], index: 0, kind: input, shape index: {}]
  %s1 = inlined_call_operand.hbm [shape: bf16[256,512], index: 1, kind: input, shape index: {}]
  %s2 = inlined_call_operand.vmem [shape: f32[1,512], index: 2, kind: input, shape index: {}]
  %s3 = inlined_call_operand.hbm [shape: f32[512,128], index: 3, kind: input, shape index: {}]
  %s4 = inlined_call_operand.vmem [shape: f32[1,128], index: 4, kind: input, shape index: {}]
  %s5 = inlined_call_operand.hbm [shape: bf16[64,128], index: 5, kind: output, shape index: {}]
  %s6 = sld [smem:[#allocation0]]
  $region65: #{tpu_custom_call.1} parent=0
    _
  %s8 = ssub.s32 1, %s6
  %s9 = scalar_select 0, %s8, %s6
  $region1: #{tpu_custom_call.1} parent=0
    #allocation2 [shape = 'u8[32768]{0}', space=vmem, size = 0x8000, scoped, tag = 'input window, operand 0']
    #allocation3 [shape = 's32[2]{0}', space=sflag, size = 0x8, scoped, tag = 'scoped memory for tpu_custom_call.1']
    #allocation4 [shape = 's32[2]{0}', space=sflag, size = 0x8, scoped, tag = 'scoped memory for tpu_custom_call.1']
    #allocation5 [shape = 'u8[262144]{0}', space=vmem, size = 0x40000, scoped, tag = 'input window, operand 1, single buffered']
    #allocation6 [shape = 's32[1]{0}', space=sflag, size = 0x4, scoped, tag = 'scoped memory for tpu_custom_call.1']
    #allocation7 [shape = 'u8[262144]{0}', space=vmem, size = 0x40000, scoped, tag = 'input window, operand 3, single buffered']
    #allocation8 [shape = 'u8[8192]{0}', space=vmem, size = 0x2000, scoped, tag = 'output window, operand 0']
    %10 = vsyncpa [#allocation3], 0
    %s11 = scalar_lea.sflag [#allocation3], 1
    %12 = vsyncpa %s11, 0
    %13 = vsyncpa [#allocation6], 0
    %14 = vsyncpa [#allocation4], 0
    %s15 = scalar_lea.sflag [#allocation4], 1
    %16 = vsyncpa %s15, 0
    loop: start=0, step=1, limit=6
    $region2: #{tpu_custom_call.1} parent=1 // loop_pre_header
      _
    $region3: #{tpu_custom_call.1} parent=1 // loop_header
      %s18 = sphi 0, %s22
      %p19 = scmp.ge.s32.totalorder %s18, 6
      %s28 = sphi 0, %s30
      %s31 = sphi 0, %s28
      %s32 = sphi 0, %s31
      %s48 = sphi 0, %s32
      %s52 = sphi 0, %s52
      %s54 = sphi 0, %s52
      %s55 = sphi 0, %s54
      %s69 = sphi 0, %s55
      %s73 = sphi 0, %s73
      %s75 = sphi 0, %s73
      %s76 = sphi 0, %s75
      %s90 = sphi 0, %s76
      %s94 = sphi 0, %s94
      %s96 = sphi 0, %s94
      %s97 = sphi 0, %s96
      %s111 = sphi 0, %s97
      %s115 = sphi 0, %s115
      %s117 = sphi 0, %s115
      %s118 = sphi 0, %s117
      %s132 = sphi 0, %s118
      %s138 = sphi 0, %s140
      %s141 = sphi 0, %s138
      %s142 = sphi 0, %s141
      %s158 = sphi 0, %s142
    $region4: #{tpu_custom_call.1} parent=1 // loop_header_branch
      %21 = sbr.rel (%p19) target = $region8
    $region5: #{tpu_custom_call.1} parent=1 // loop_body
      %s23 = ssub.s32 %s18, 1
      %s24 = ssub.s32 %s18, 2
      %s25 = sadd.s32 %s18, 1
      %s26 = ssub.s32 %s18, %s25
      %p27 = scmp.eq.s32.totalorder %s26, 0
      %s29 = sadd.s32 %s28, 1
      %s30 = scalar_select %p27, %s28, %s29
      %p33 = pneg %p27
      %p34 = scmp.eq.s32.totalorder %s18, 3
      %p35 = por %p33, %p34
      %p36 = scmp.ne.s32.totalorder %s28, %s31
      %p37 = scmp.eq.s32.totalorder %s18, 0
      %p38 = por %p36, %p37
      %p39 = scmp.ne.s32.totalorder %s28, %s31
      %p40 = scmp.eq.s32.totalorder %s23, 3
      %p41 = por %p39, %p40
      %p42 = scmp.ne.s32.totalorder %s31, %s32
      %p43 = scmp.eq.s32.totalorder %s23, 0
      %p44 = por %p42, %p43
      %p45 = scmp.ne.s32.totalorder %s31, %s32
      %p46 = scmp.eq.s32.totalorder %s24, 3
      %p47 = por %p45, %p46
      %p49 = scmp.ne.s32.totalorder %s32, %s48
      %p50 = scmp.eq.s32.totalorder %s24, 0
      %p51 = por %p49, %p50
      %s53 = sadd.s32 %s52, 1
      %p56 = scmp.eq.s32.totalorder %s18, 3
      %p57 = scmp.ne.s32.totalorder %s52, %s54
      %p58 = scmp.eq.s32.totalorder %s18, 0
      %p59 = por %p57, %p58
      %p60 = scmp.ne.s32.totalorder %s52, %s54
      %p61 = scmp.eq.s32.totalorder %s23, 3
      %p62 = por %p60, %p61
      %p63 = scmp.ne.s32.totalorder %s54, %s55
      %p64 = scmp.eq.s32.totalorder %s23, 0
      %p65 = por %p63, %p64
      %p66 = scmp.ne.s32.totalorder %s54, %s55
      %p67 = scmp.eq.s32.totalorder %s24, 3
      %p68 = por %p66, %p67
      %p70 = scmp.ne.s32.totalorder %s55, %s69
      %p71 = scmp.eq.s32.totalorder %s24, 0
      %p72 = por %p70, %p71
      %s74 = sadd.s32 %s73, 1
      %p77 = scmp.eq.s32.totalorder %s18, 3
      %p78 = scmp.ne.s32.totalorder %s73, %s75
      %p79 = scmp.eq.s32.totalorder %s18, 0
      %p80 = por %p78, %p79
      %p81 = scmp.ne.s32.totalorder %s73, %s75
      %p82 = scmp.eq.s32.totalorder %s23, 3
      %p83 = por %p81, %p82
      %p84 = scmp.ne.s32.totalorder %s75, %s76
      %p85 = scmp.eq.s32.totalorder %s23, 0
      %p86 = por %p84, %p85
      %p87 = scmp.ne.s32.totalorder %s75, %s76
      %p88 = scmp.eq.s32.totalorder %s24, 3
      %p89 = por %p87, %p88
      %p91 = scmp.ne.s32.totalorder %s76, %s90
      %p92 = scmp.eq.s32.totalorder %s24, 0
      %p93 = por %p91, %p92
      %s95 = sadd.s32 %s94, 1
      %p98 = scmp.eq.s32.totalorder %s18, 3
      %p99 = scmp.ne.s32.totalorder %s94, %s96
      %p100 = scmp.eq.s32.totalorder %s18, 0
      %p101 = por %p99, %p100
      %p102 = scmp.ne.s32.totalorder %s94, %s96
      %p103 = scmp.eq.s32.totalorder %s23, 3
      %p104 = por %p102, %p103
      %p105 = scmp.ne.s32.totalorder %s96, %s97
      %p106 = scmp.eq.s32.totalorder %s23, 0
      %p107 = por %p105, %p106
      %p108 = scmp.ne.s32.totalorder %s96, %s97
      %p109 = scmp.eq.s32.totalorder %s24, 3
      %p110 = por %p108, %p109
      %p112 = scmp.ne.s32.totalorder %s97, %s111
      %p113 = scmp.eq.s32.totalorder %s24, 0
      %p114 = por %p112, %p113
      %s116 = sadd.s32 %s115, 1
      %p119 = scmp.eq.s32.totalorder %s18, 3
      %p120 = scmp.ne.s32.totalorder %s115, %s117
      %p121 = scmp.eq.s32.totalorder %s18, 0
      %p122 = por %p120, %p121
      %p123 = scmp.ne.s32.totalorder %s115, %s117
      %p124 = scmp.eq.s32.totalorder %s23, 3
      %p125 = por %p123, %p124
      %p126 = scmp.ne.s32.totalorder %s117, %s118
      %p127 = scmp.eq.s32.totalorder %s23, 0
      %p128 = por %p126, %p127
      %p129 = scmp.ne.s32.totalorder %s117, %s118
      %p130 = scmp.eq.s32.totalorder %s24, 3
      %p131 = por %p129, %p130
      %p133 = scmp.ne.s32.totalorder %s118, %s132
      %p134 = scmp.eq.s32.totalorder %s24, 0
      %p135 = por %p133, %p134
      %s136 = ssub.s32 %s18, %s25
      %p137 = scmp.eq.s32.totalorder %s136, 0
      %s139 = sadd.s32 %s138, 1
      %s140 = scalar_select %p137, %s138, %s139
      %p143 = pneg %p137
      %p144 = scmp.eq.s32.totalorder %s18, 3
      %p145 = por %p143, %p144
      %p146 = scmp.ne.s32.totalorder %s138, %s141
      %p147 = scmp.eq.s32.totalorder %s18, 0
      %p148 = por %p146, %p147
      %p149 = scmp.ne.s32.totalorder %s138, %s141
      %p150 = scmp.eq.s32.totalorder %s23, 3
      %p151 = por %p149, %p150
      %p152 = scmp.ne.s32.totalorder %s141, %s142
      %p153 = scmp.eq.s32.totalorder %s23, 0
      %p154 = por %p152, %p153
      %p155 = scmp.ne.s32.totalorder %s141, %s142
      %p156 = scmp.eq.s32.totalorder %s24, 3
      %p157 = por %p155, %p156
      %p159 = scmp.ne.s32.totalorder %s142, %s158
      %p160 = scmp.eq.s32.totalorder %s24, 0
      %p161 = por %p159, %p160
      %p162 = scmp.le.s32.totalorder 1, %s18
      %p163 = scmp.lt.s32.totalorder %s18, 5
      %p164 = pnand %p162, %p163
      %p165 = pneg %p164
      // Predicated region
      $region9: #{tpu_custom_call.1} parent=5 // pred_check
        _
      $region10: #{tpu_custom_call.1} parent=5 // pred_check_branch
        %167 = sbr.rel (%p164) target = $region12
      $region11: #{tpu_custom_call.1} parent=5 // pred_region
        %s168 = ssub.s32 %s18, 1
        // Predicated region
        $region13: #{tpu_custom_call.1} parent=11 // pred_check
          %p169 = pneg %p65
        $region14: #{tpu_custom_call.1} parent=11 // pred_check_branch
          %171 = sbr.rel (%p169) target = $region16
        $region15: #{tpu_custom_call.1} parent=11 // pred_region
          %s173 = ssub.s32 8192, 8192
          %174 = vsyncadd [#allocation6], %s173
          %s175 = sshll.u32 [#allocation5], 4
          %s176 = int_to_ptr.vmem [resolvable:$true] %s175
          %181 = dma.hbm_to_vmem [thread:$0]  %s1, 8192, %s176, [#allocation6], 256, 256, 16
        $region16: #{tpu_custom_call.1} parent=11 // pred_fallthru
          _
        // Predicated region
        $region17: #{tpu_custom_call.1} parent=11 // pred_check
          %p182 = pneg %p86
        $region18: #{tpu_custom_call.1} parent=11 // pred_check_branch
          %184 = sbr.rel (%p182) target = $region20
        $region19: #{tpu_custom_call.1} parent=11 // pred_region
          _
        $region20: #{tpu_custom_call.1} parent=11 // pred_fallthru
          _
        // Predicated region
        $region21: #{tpu_custom_call.1} parent=11 // pred_check
          %p185 = pneg %p107
        $region22: #{tpu_custom_call.1} parent=11 // pred_check_branch
          %187 = sbr.rel (%p185) target = $region24
        $region23: #{tpu_custom_call.1} parent=11 // pred_region
          %s189 = ssub.s32 8192, 8192
          %190 = vsyncadd [#allocation6], %s189
          %s191 = sshll.u32 [#allocation7], 4
          %s192 = int_to_ptr.vmem [resolvable:$true] %s191
          %197 = dma.hbm_to_vmem [thread:$0]  %s3, 8192, %s192, [#allocation6], 128, 128, 8
        $region24: #{tpu_custom_call.1} parent=11 // pred_fallthru
          _
        // Predicated region
        $region25: #{tpu_custom_call.1} parent=11 // pred_check
          %p198 = pneg %p128
        $region26: #{tpu_custom_call.1} parent=11 // pred_check_branch
          %200 = sbr.rel (%p198) target = $region28
        $region27: #{tpu_custom_call.1} parent=11 // pred_region
          _
        $region28: #{tpu_custom_call.1} parent=11 // pred_fallthru
          _
      $region12: #{tpu_custom_call.1} parent=5 // pred_fallthru
        _
      %p201 = scmp.lt.s32.totalorder %s18, 4
      // Predicated region
      $region29: #{tpu_custom_call.1} parent=5 // pred_check
        %p202 = pneg %p201
      $region30: #{tpu_custom_call.1} parent=5 // pred_check_branch
        %204 = sbr.rel (%p202) target = $region32
      $region31: #{tpu_custom_call.1} parent=5 // pred_region
        // Predicated region
        $region33: #{tpu_custom_call.1} parent=31 // pred_check
          %p205 = pneg %p38
        $region34: #{tpu_custom_call.1} parent=31 // pred_check_branch
          %207 = sbr.rel (%p205) target = $region36
        $region35: #{tpu_custom_call.1} parent=31 // pred_region
          %s208 = sand.u32 %s28, 1
          %s209 = scalar_lea.sflag [#allocation3], %s208
          %s210 = sand.u32 %s28, 1
          %s211 = smul.addr %s210, 32
          %s212 = scalar_lea.vmem [#allocation2], %s211
          %s213 = smul.u32 2, %s18
          %s215 = ssub.s32 512, 512
          %216 = vsyncadd %s209, %s215
          %s217 = smul.addr %s213, 2
          %s218 = smul.addr %s217, 128
          %s219 = scalar_lea.hbm %s0, %s218
          %s220 = sshll.u32 %s212, 4
          %s221 = int_to_ptr.vmem [resolvable:$true] %s220
          %226 = dma.hbm_to_vmem [thread:$0]  %s219, 512, %s221, %s209, 256, 256, 16
        $region36: #{tpu_custom_call.1} parent=31 // pred_fallthru
          _
      $region32: #{tpu_custom_call.1} parent=5 // pred_fallthru
        _
      %p227 = scmp.le.s32.totalorder 1, %s18
      %p228 = scmp.lt.s32.totalorder %s18, 5
      %p229 = pnand %p227, %p228
      %p230 = pneg %p229
      // Predicated region
      $region37: #{tpu_custom_call.1} parent=5 // pred_check
        _
      $region38: #{tpu_custom_call.1} parent=5 // pred_check_branch
        %232 = sbr.rel (%p229) target = $region40
      $region39: #{tpu_custom_call.1} parent=5 // pred_region
        %s233 = ssub.s32 %s18, 1
        %s234 = sand.u32 %s31, 1
        %s235 = scalar_lea.sflag [#allocation3], %s234
        %s236 = sand.u32 %s31, 1
        %s237 = smul.addr %s236, 32
        %s238 = scalar_lea.vmem [#allocation2], %s237
        // Predicated region
        $region41: #{tpu_custom_call.1} parent=39 // pred_check
          %p239 = pneg %p44
        $region42: #{tpu_custom_call.1} parent=39 // pred_check_branch
          %241 = sbr.rel (%p239) target = $region44
        $region43: #{tpu_custom_call.1} parent=39 // pred_region
          %242 = dma.done %s235, 512
        $region44: #{tpu_custom_call.1} parent=39 // pred_fallthru
          _
        // Predicated region
        $region45: #{tpu_custom_call.1} parent=39 // pred_check
          %p243 = pneg %p65
        $region46: #{tpu_custom_call.1} parent=39 // pred_check_branch
          %245 = sbr.rel (%p243) target = $region48
        $region47: #{tpu_custom_call.1} parent=39 // pred_region
          %246 = dma.done [#allocation6], 8192
        $region48: #{tpu_custom_call.1} parent=39 // pred_fallthru
          _
        // Predicated region
        $region49: #{tpu_custom_call.1} parent=39 // pred_check
          %p247 = pneg %p107
        $region50: #{tpu_custom_call.1} parent=39 // pred_check_branch
          %249 = sbr.rel (%p247) target = $region52
        $region51: #{tpu_custom_call.1} parent=39 // pred_region
          %250 = dma.done [#allocation6], 8192
        $region52: #{tpu_custom_call.1} parent=39 // pred_fallthru
          _
        %s251 = sand.u32 %s31, 1
        %s252 = scalar_lea.sflag [#allocation3], %s251
        %s253 = sand.u32 %s31, 1
        %s254 = smul.addr %s253, 32
        %s255 = scalar_lea.vmem [#allocation2], %s254
        %p256 = pneg %p44
        %p257 = pneg %p41
        %p258 = pneg %p65
        %p259 = pneg %p62
        %p260 = pneg %p86
        %p261 = pneg %p83
        %p262 = pneg %p107
        %p263 = pneg %p104
        %p264 = pneg %p128
        %p265 = pneg %p125
        %p266 = pneg %p154
        %p267 = pneg %p151
        %s268 = sand.u32 %s141, 1
        %s269 = scalar_lea.sflag [#allocation4], %s268
        %s270 = sand.u32 %s141, 1
        %s271 = smul.addr %s270, 8
        %s272 = scalar_lea.vmem [#allocation8], %s271
        %s273 = smul.u32 2, %s23
        %s274 = smul.u32 2, %s23
        %v275 = vld [vmem:[%s238] sm:$0xff]
        %v276 = vld [vmem:[%s238 + $0x8] sm:$0xff]
        %v277 = vld [vmem:[%s238 + $0x10] sm:$0xff]
        %v278 = vld [vmem:[%s238 + $0x18] sm:$0xff]
        %v279 = vpack.c.bf16 %v277, %v275
        %v280 = vpack.c.bf16 %v278, %v276
        %v281 = vld [vmem:[#allocation5] sm:$0xff]
        %v282 = vld [vmem:[#allocation5 + $0x8] sm:$0xff]
        %v283 = vld [vmem:[#allocation5 + $0x10] sm:$0xff]
        %v284 = vld [vmem:[#allocation5 + $0x18] sm:$0xff]
        %v285 = vld [vmem:[#allocation5 + $0x20] sm:$0xff]
        %v286 = vld [vmem:[#allocation5 + $0x28] sm:$0xff]
        %v287 = vld [vmem:[#allocation5 + $0x30] sm:$0xff]
        %v288 = vld [vmem:[#allocation5 + $0x38] sm:$0xff]
        %v289 = vld [vmem:[#allocation5 + $0x40] sm:$0xff]
        %v290 = vld [vmem:[#allocation5 + $0x48] sm:$0xff]
        %v291 = vld [vmem:[#allocation5 + $0x50] sm:$0xff]
        %v292 = vld [vmem:[#allocation5 + $0x58] sm:$0xff]
        %v293 = vld [vmem:[#allocation5 + $0x60] sm:$0xff]
        %v294 = vld [vmem:[#allocation5 + $0x68] sm:$0xff]
        %v295 = vld [vmem:[#allocation5 + $0x70] sm:$0xff]
        %v296 = vld [vmem:[#allocation5 + $0x78] sm:$0xff]
        %v297 = vld [vmem:[#allocation5 + $0x80] sm:$0xff]
        %v298 = vld [vmem:[#allocation5 + $0x88] sm:$0xff]
        %v299 = vld [vmem:[#allocation5 + $0x90] sm:$0xff]
        %v300 = vld [vmem:[#allocation5 + $0x98] sm:$0xff]
        %v301 = vld [vmem:[#allocation5 + $0xa0] sm:$0xff]
        %v302 = vld [vmem:[#allocation5 + $0xa8] sm:$0xff]
        %v303 = vld [vmem:[#allocation5 + $0xb0] sm:$0xff]
        %v304 = vld [vmem:[#allocation5 + $0xb8] sm:$0xff]
        %v305 = vld [vmem:[#allocation5 + $0xc0] sm:$0xff]
        %v306 = vld [vmem:[#allocation5 + $0xc8] sm:$0xff]
        %v307 = vld [vmem:[#allocation5 + $0xd0] sm:$0xff]
        %v308 = vld [vmem:[#allocation5 + $0xd8] sm:$0xff]
        %v309 = vld [vmem:[#allocation5 + $0xe0] sm:$0xff]
        %v310 = vld [vmem:[#allocation5 + $0xe8] sm:$0xff]
        %v311 = vld [vmem:[#allocation5 + $0xf0] sm:$0xff]
        %v312 = vld [vmem:[#allocation5 + $0xf8] sm:$0xff]
        %v313 = vld [vmem:[#allocation5 + $0x100] sm:$0xff]
        %v314 = vld [vmem:[#allocation5 + $0x108] sm:$0xff]
        %v315 = vld [vmem:[#allocation5 + $0x110] sm:$0xff]
        %v316 = vld [vmem:[#allocation5 + $0x118] sm:$0xff]
        %v317 = vld [vmem:[#allocation5 + $0x120] sm:$0xff]
        %v318 = vld [vmem:[#allocation5 + $0x128] sm:$0xff]
        %v319 = vld [vmem:[#allocation5 + $0x130] sm:$0xff]
        %v320 = vld [vmem:[#allocation5 + $0x138] sm:$0xff]
        %v321 = vld [vmem:[#allocation5 + $0x140] sm:$0xff]
        %v322 = vld [vmem:[#allocation5 + $0x148] sm:$0xff]
        %v323 = vld [vmem:[#allocation5 + $0x150] sm:$0xff]
        %v324 = vld [vmem:[#allocation5 + $0x158] sm:$0xff]
        %v325 = vld [vmem:[#allocation5 + $0x160] sm:$0xff]
        %v326 = vld [vmem:[#allocation5 + $0x168] sm:$0xff]
        %v327 = vld [vmem:[#allocation5 + $0x170] sm:$0xff]
        %v328 = vld [vmem:[#allocation5 + $0x178] sm:$0xff]
        %v329 = vld [vmem:[#allocation5 + $0x180] sm:$0xff]
        %v330 = vld [vmem:[#allocation5 + $0x188] sm:$0xff]
        %v331 = vld [vmem:[#allocation5 + $0x190] sm:$0xff]
        %v332 = vld [vmem:[#allocation5 + $0x198] sm:$0xff]
        %v333 = vld [vmem:[#allocation5 + $0x1a0] sm:$0xff]
        %v334 = vld [vmem:[#allocation5 + $0x1a8] sm:$0xff]
        %v335 = vld [vmem:[#allocation5 + $0x1b0] sm:$0xff]
        %v336 = vld [vmem:[#allocation5 + $0x1b8] sm:$0xff]
        %v337 = vld [vmem:[#allocation5 + $0x1c0] sm:$0xff]
        %v338 = vld [vmem:[#allocation5 + $0x1c8] sm:$0xff]
        %v339 = vld [vmem:[#allocation5 + $0x1d0] sm:$0xff]
        %v340 = vld [vmem:[#allocation5 + $0x1d8] sm:$0xff]
        %v341 = vld [vmem:[#allocation5 + $0x1e0] sm:$0xff]
        %v342 = vld [vmem:[#allocation5 + $0x1e8] sm:$0xff]
        %v343 = vld [vmem:[#allocation5 + $0x1f0] sm:$0xff]
        %v344 = vld [vmem:[#allocation5 + $0x1f8] sm:$0xff]
        %v345 = vld [vmem:[%s2] sm:$0xf]
        %v347 = vlaneseq
        %v348 = vshrl.u32 %v347, 7
        %v349 = vsub.s32 0, %v348
        %v350 = vrot.slane %v345, %v349
        %v351 = vlaneseq
        %v352 = vshrl.u32 %v351, 7
        %v353 = vsub.s32 1, %v352
        %v354 = vrot.slane %v345, %v353
        %v355 = vlaneseq
        %v356 = vshrl.u32 %v355, 7
        %v357 = vsub.s32 2, %v356
        %v358 = vrot.slane %v345, %v357
        %v359 = vlaneseq
        %v360 = vshrl.u32 %v359, 7
        %v361 = vsub.s32 3, %v360
        %v362 = vrot.slane %v345, %v361
        %v431 = vunpack.c.l.b16 %v281
        %v432 = vunpack.c.h.b16 %v281
        %v433 = vunpack.c.l.b16 %v282
        %v434 = vunpack.c.h.b16 %v282
        %v435 = vunpack.c.l.b16 %v283
        %v436 = vunpack.c.h.b16 %v283
        %v437 = vunpack.c.l.b16 %v284
        %v438 = vunpack.c.h.b16 %v284
        %v439 = vunpack.c.l.b16 %v285
        %v440 = vunpack.c.h.b16 %v285
        %v441 = vunpack.c.l.b16 %v286
        %v442 = vunpack.c.h.b16 %v286
        %v443 = vunpack.c.l.b16 %v287
        %v444 = vunpack.c.h.b16 %v287
        %v445 = vunpack.c.l.b16 %v288
        %v446 = vunpack.c.h.b16 %v288
        %v447 = vunpack.c.l.b16 %v289
        %v448 = vunpack.c.h.b16 %v289
        %v449 = vunpack.c.l.b16 %v290
        %v450 = vunpack.c.h.b16 %v290
        %v451 = vunpack.c.l.b16 %v291
        %v452 = vunpack.c.h.b16 %v291
        %v453 = vunpack.c.l.b16 %v292
        %v454 = vunpack.c.h.b16 %v292
        %v455 = vunpack.c.l.b16 %v293
        %v456 = vunpack.c.h.b16 %v293
        %v457 = vunpack.c.l.b16 %v294
        %v458 = vunpack.c.h.b16 %v294
        %v459 = vunpack.c.l.b16 %v295
        %v460 = vunpack.c.h.b16 %v295
        %v461 = vunpack.c.l.b16 %v296
        %v462 = vunpack.c.h.b16 %v296
        %v463 = vunpack.c.l.b16 %v297
        %v464 = vunpack.c.h.b16 %v297
        %v465 = vunpack.c.l.b16 %v298
        %v466 = vunpack.c.h.b16 %v298
        %v467 = vunpack.c.l.b16 %v299
        %v468 = vunpack.c.h.b16 %v299
        %v469 = vunpack.c.l.b16 %v300
        %v470 = vunpack.c.h.b16 %v300
        %v471 = vunpack.c.l.b16 %v301
        %v472 = vunpack.c.h.b16 %v301
        %v473 = vunpack.c.l.b16 %v302
        %v474 = vunpack.c.h.b16 %v302
        %v475 = vunpack.c.l.b16 %v303
        %v476 = vunpack.c.h.b16 %v303
        %v477 = vunpack.c.l.b16 %v304
        %v478 = vunpack.c.h.b16 %v304
        %v479 = vunpack.c.l.b16 %v305
        %v480 = vunpack.c.h.b16 %v305
        %v481 = vunpack.c.l.b16 %v306
        %v482 = vunpack.c.h.b16 %v306
        %v483 = vunpack.c.l.b16 %v307
        %v484 = vunpack.c.h.b16 %v307
        %v485 = vunpack.c.l.b16 %v308
        %v486 = vunpack.c.h.b16 %v308
        %v487 = vunpack.c.l.b16 %v309
        %v488 = vunpack.c.h.b16 %v309
        %v489 = vunpack.c.l.b16 %v310
        %v490 = vunpack.c.h.b16 %v310
        %v491 = vunpack.c.l.b16 %v311
        %v492 = vunpack.c.h.b16 %v311
        %v493 = vunpack.c.l.b16 %v312
        %v494 = vunpack.c.h.b16 %v312
        %v495 = vunpack.c.l.b16 %v313
        %v496 = vunpack.c.h.b16 %v313
        %v497 = vunpack.c.l.b16 %v314
        %v498 = vunpack.c.h.b16 %v314
        %v499 = vunpack.c.l.b16 %v315
        %v500 = vunpack.c.h.b16 %v315
        %v501 = vunpack.c.l.b16 %v316
        %v502 = vunpack.c.h.b16 %v316
        %v503 = vunpack.c.l.b16 %v317
        %v504 = vunpack.c.h.b16 %v317
        %v505 = vunpack.c.l.b16 %v318
        %v506 = vunpack.c.h.b16 %v318
        %v507 = vunpack.c.l.b16 %v319
        %v508 = vunpack.c.h.b16 %v319
        %v509 = vunpack.c.l.b16 %v320
        %v510 = vunpack.c.h.b16 %v320
        %v511 = vunpack.c.l.b16 %v321
        %v512 = vunpack.c.h.b16 %v321
        %v513 = vunpack.c.l.b16 %v322
        %v514 = vunpack.c.h.b16 %v322
        %v515 = vunpack.c.l.b16 %v323
        %v516 = vunpack.c.h.b16 %v323
        %v517 = vunpack.c.l.b16 %v324
        %v518 = vunpack.c.h.b16 %v324
        %v519 = vunpack.c.l.b16 %v325
        %v520 = vunpack.c.h.b16 %v325
        %v521 = vunpack.c.l.b16 %v326
        %v522 = vunpack.c.h.b16 %v326
        %v523 = vunpack.c.l.b16 %v327
        %v524 = vunpack.c.h.b16 %v327
        %v525 = vunpack.c.l.b16 %v328
        %v526 = vunpack.c.h.b16 %v328
        %v527 = vunpack.c.l.b16 %v329
        %v528 = vunpack.c.h.b16 %v329
        %v529 = vunpack.c.l.b16 %v330
        %v530 = vunpack.c.h.b16 %v330
        %v531 = vunpack.c.l.b16 %v331
        %v532 = vunpack.c.h.b16 %v331
        %v533 = vunpack.c.l.b16 %v332
        %v534 = vunpack.c.h.b16 %v332
        %v535 = vunpack.c.l.b16 %v333
        %v536 = vunpack.c.h.b16 %v333
        %v537 = vunpack.c.l.b16 %v334
        %v538 = vunpack.c.h.b16 %v334
        %v539 = vunpack.c.l.b16 %v335
        %v540 = vunpack.c.h.b16 %v335
        %v541 = vunpack.c.l.b16 %v336
        %v542 = vunpack.c.h.b16 %v336
        %v543 = vunpack.c.l.b16 %v337
        %v544 = vunpack.c.h.b16 %v337
        %v545 = vunpack.c.l.b16 %v338
        %v546 = vunpack.c.h.b16 %v338
        %v547 = vunpack.c.l.b16 %v339
        %v548 = vunpack.c.h.b16 %v339
        %v549 = vunpack.c.l.b16 %v340
        %v550 = vunpack.c.h.b16 %v340
        %v551 = vunpack.c.l.b16 %v341
        %v552 = vunpack.c.h.b16 %v341
        %v553 = vunpack.c.l.b16 %v342
        %v554 = vunpack.c.h.b16 %v342
        %v555 = vunpack.c.l.b16 %v343
        %v556 = vunpack.c.h.b16 %v343
        %v557 = vunpack.c.l.b16 %v344
        %v558 = vunpack.c.h.b16 %v344
        %v559 = vpack.c.b16 %v435, %v431
        %v560 = vpack.c.b16 %v436, %v432
        %v561 = vpack.c.b16 %v437, %v433
        %v562 = vpack.c.b16 %v438, %v434
        %v563 = vpack.c.b16 %v443, %v439
        %v564 = vpack.c.b16 %v444, %v440
        %v565 = vpack.c.b16 %v445, %v441
        %v566 = vpack.c.b16 %v446, %v442
        %v567 = vpack.c.b16 %v451, %v447
        %v568 = vpack.c.b16 %v452, %v448
        %v569 = vpack.c.b16 %v453, %v449
        %v570 = vpack.c.b16 %v454, %v450
        %v571 = vpack.c.b16 %v459, %v455
        %v572 = vpack.c.b16 %v460, %v456
        %v573 = vpack.c.b16 %v461, %v457
        %v574 = vpack.c.b16 %v462, %v458
        %v575 = vpack.c.b16 %v467, %v463
        %v576 = vpack.c.b16 %v468, %v464
        %v577 = vpack.c.b16 %v469, %v465
        %v578 = vpack.c.b16 %v470, %v466
        %v579 = vpack.c.b16 %v475, %v471
        %v580 = vpack.c.b16 %v476, %v472
        %v581 = vpack.c.b16 %v477, %v473
        %v582 = vpack.c.b16 %v478, %v474
        %v583 = vpack.c.b16 %v483, %v479
        %v584 = vpack.c.b16 %v484, %v480
        %v585 = vpack.c.b16 %v485, %v481
        %v586 = vpack.c.b16 %v486, %v482
        %v587 = vpack.c.b16 %v491, %v487
        %v588 = vpack.c.b16 %v492, %v488
        %v589 = vpack.c.b16 %v493, %v489
        %v590 = vpack.c.b16 %v494, %v490
        %v591 = vpack.c.b16 %v499, %v495
        %v592 = vpack.c.b16 %v500, %v496
        %v593 = vpack.c.b16 %v501, %v497
        %v594 = vpack.c.b16 %v502, %v498
        %v595 = vpack.c.b16 %v507, %v503
        %v596 = vpack.c.b16 %v508, %v504
        %v597 = vpack.c.b16 %v509, %v505
        %v598 = vpack.c.b16 %v510, %v506
        %v599 = vpack.c.b16 %v515, %v511
        %v600 = vpack.c.b16 %v516, %v512
        %v601 = vpack.c.b16 %v517, %v513
        %v602 = vpack.c.b16 %v518, %v514
        %v603 = vpack.c.b16 %v523, %v519
        %v604 = vpack.c.b16 %v524, %v520
        %v605 = vpack.c.b16 %v525, %v521
        %v606 = vpack.c.b16 %v526, %v522
        %v607 = vpack.c.b16 %v531, %v527
        %v608 = vpack.c.b16 %v532, %v528
        %v609 = vpack.c.b16 %v533, %v529
        %v610 = vpack.c.b16 %v534, %v530
        %v611 = vpack.c.b16 %v539, %v535
        %v612 = vpack.c.b16 %v540, %v536
        %v613 = vpack.c.b16 %v541, %v537
        %v614 = vpack.c.b16 %v542, %v538
        %v615 = vpack.c.b16 %v547, %v543
        %v616 = vpack.c.b16 %v548, %v544
        %v617 = vpack.c.b16 %v549, %v545
        %v618 = vpack.c.b16 %v550, %v546
        %v619 = vpack.c.b16 %v555, %v551
        %v620 = vpack.c.b16 %v556, %v552
        %v621 = vpack.c.b16 %v557, %v553
        %v622 = vpack.c.b16 %v558, %v554
        %687 = vmatprep.subr.bf16.mxu0 %v560
        %688 = vmatpush1.bf16.msra.mxu0 %v559
        %689 = vmatprep.subr.bf16.mxu0 %v564
        %690 = vmatpush1.bf16.msra.mxu0 %v563
        %691 = vmatprep.subr.bf16.mxu0 %v568
        %692 = vmatpush1.bf16.msra.mxu0 %v567
        %693 = vmatprep.subr.bf16.mxu0 %v572
        %694 = vmatpush1.bf16.msra.mxu0 %v571
        %695 = vmatprep.subr.bf16.mxu0 %v576
        %696 = vmatpush1.bf16.msra.mxu0 %v575
        %697 = vmatprep.subr.bf16.mxu0 %v580
        %698 = vmatpush1.bf16.msra.mxu0 %v579
        %699 = vmatprep.subr.bf16.mxu0 %v584
        %700 = vmatpush1.bf16.msra.mxu0 %v583
        %701 = vmatprep.subr.bf16.mxu0 %v588
        %702 = vmatpush1.bf16.msra.mxu0 %v587
        %703 = vmatprep.subr.bf16.mxu0 %v592
        %704 = vmatpush1.bf16.msra.mxu0 %v591
        %705 = vmatprep.subr.bf16.mxu0 %v596
        %706 = vmatpush1.bf16.msra.mxu0 %v595
        %707 = vmatprep.subr.bf16.mxu0 %v600
        %708 = vmatpush1.bf16.msra.mxu0 %v599
        %709 = vmatprep.subr.bf16.mxu0 %v604
        %710 = vmatpush1.bf16.msra.mxu0 %v603
        %711 = vmatprep.subr.bf16.mxu0 %v608
        %712 = vmatpush1.bf16.msra.mxu0 %v607
        %713 = vmatprep.subr.bf16.mxu0 %v612
        %714 = vmatpush1.bf16.msra.mxu0 %v611
        %715 = vmatprep.subr.bf16.mxu0 %v616
        %716 = vmatpush1.bf16.msra.mxu0 %v615
        %717 = vmatprep.subr.bf16.mxu0 %v620
        %718 = vmatpush1.bf16.msra.mxu0 %v619
        %719 = vmatprep.mubr.bf16.mxu0 %v280
        %720 = vmatmul.mubr.bf16.gmra.mrb[0].mxu0 %v279
        %v721 = vpop.f32.mrb[0].mxu0
        %v722 = vadd.f32 %v350, %v721
        %v723 = vpop.f32.mrb[0].mxu0
        %v724 = vadd.f32 %v354, %v723
        %v725 = vpop.f32.mrb[0].mxu0
        %v726 = vadd.f32 %v350, %v725
        %v727 = vpop.f32.mrb[0].mxu0
        %v728 = vadd.f32 %v354, %v727
        %729 = vdwg.mxu0
        %730 = vmatprep.subr.bf16.mxu0 %v562
        %731 = vmatpush1.bf16.msra.mxu0 %v561
        %732 = vmatprep.subr.bf16.mxu0 %v566
        %733 = vmatpush1.bf16.msra.mxu0 %v565
        %734 = vmatprep.subr.bf16.mxu0 %v570
        %735 = vmatpush1.bf16.msra.mxu0 %v569
        %736 = vmatprep.subr.bf16.mxu0 %v574
        %737 = vmatpush1.bf16.msra.mxu0 %v573
        %738 = vmatprep.subr.bf16.mxu0 %v578
        %739 = vmatpush1.bf16.msra.mxu0 %v577
        %740 = vmatprep.subr.bf16.mxu0 %v582
        %741 = vmatpush1.bf16.msra.mxu0 %v581
        %742 = vmatprep.subr.bf16.mxu0 %v586
        %743 = vmatpush1.bf16.msra.mxu0 %v585
        %744 = vmatprep.subr.bf16.mxu0 %v590
        %745 = vmatpush1.bf16.msra.mxu0 %v589
        %746 = vmatprep.subr.bf16.mxu0 %v594
        %747 = vmatpush1.bf16.msra.mxu0 %v593
        %748 = vmatprep.subr.bf16.mxu0 %v598
        %749 = vmatpush1.bf16.msra.mxu0 %v597
        %750 = vmatprep.subr.bf16.mxu0 %v602
        %751 = vmatpush1.bf16.msra.mxu0 %v601
        %752 = vmatprep.subr.bf16.mxu0 %v606
        %753 = vmatpush1.bf16.msra.mxu0 %v605
        %754 = vmatprep.subr.bf16.mxu0 %v610
        %755 = vmatpush1.bf16.msra.mxu0 %v609
        %756 = vmatprep.subr.bf16.mxu0 %v614
        %757 = vmatpush1.bf16.msra.mxu0 %v613
        %758 = vmatprep.subr.bf16.mxu0 %v618
        %759 = vmatpush1.bf16.msra.mxu0 %v617
        %760 = vmatprep.subr.bf16.mxu0 %v622
        %761 = vmatpush1.bf16.msra.mxu0 %v621
        %762 = vmatprep.mubr.bf16.mxu0 %v280
        %763 = vmatmul.mubr.bf16.gmra.mrb[0].mxu0 %v279
        %v764 = vpop.f32.mrb[0].mxu0
        %v765 = vadd.f32 %v358, %v764
        %v766 = vpop.f32.mrb[0].mxu0
        %v767 = vadd.f32 %v362, %v766
        %v768 = vpop.f32.mrb[0].mxu0
        %v769 = vadd.f32 %v358, %v768
        %v770 = vpop.f32.mrb[0].mxu0
        %v771 = vadd.f32 %v362, %v770
        %772 = vdwg.mxu0
        %v773 = vmax.f32 %v722, 0.0
        %v774 = vmax.f32 %v724, 0.0
        %v775 = vmax.f32 %v765, 0.0
        %v776 = vmax.f32 %v767, 0.0
        %v777 = vmax.f32 %v726, 0.0
        %v778 = vmax.f32 %v728, 0.0
        %v779 = vmax.f32 %v769, 0.0
        %v780 = vmax.f32 %v771, 0.0
        %v781 = vld [vmem:[#allocation7] sm:$0xff]
        %v782 = vld [vmem:[#allocation7 + $0x8] sm:$0xff]
        %v783 = vld [vmem:[#allocation7 + $0x10] sm:$0xff]
        %v784 = vld [vmem:[#allocation7 + $0x18] sm:$0xff]
        %v785 = vld [vmem:[#allocation7 + $0x20] sm:$0xff]
        %v786 = vld [vmem:[#allocation7 + $0x28] sm:$0xff]
        %v787 = vld [vmem:[#allocation7 + $0x30] sm:$0xff]
        %v788 = vld [vmem:[#allocation7 + $0x38] sm:$0xff]
        %v789 = vld [vmem:[#allocation7 + $0x40] sm:$0xff]
        %v790 = vld [vmem:[#allocation7 + $0x48] sm:$0xff]
        %v791 = vld [vmem:[#allocation7 + $0x50] sm:$0xff]
        %v792 = vld [vmem:[#allocation7 + $0x58] sm:$0xff]
        %v793 = vld [vmem:[#allocation7 + $0x60] sm:$0xff]
        %v794 = vld [vmem:[#allocation7 + $0x68] sm:$0xff]
        %v795 = vld [vmem:[#allocation7 + $0x70] sm:$0xff]
        %v796 = vld [vmem:[#allocation7 + $0x78] sm:$0xff]
        %v797 = vld [vmem:[#allocation7 + $0x80] sm:$0xff]
        %v798 = vld [vmem:[#allocation7 + $0x88] sm:$0xff]
        %v799 = vld [vmem:[#allocation7 + $0x90] sm:$0xff]
        %v800 = vld [vmem:[#allocation7 + $0x98] sm:$0xff]
        %v801 = vld [vmem:[#allocation7 + $0xa0] sm:$0xff]
        %v802 = vld [vmem:[#allocation7 + $0xa8] sm:$0xff]
        %v803 = vld [vmem:[#allocation7 + $0xb0] sm:$0xff]
        %v804 = vld [vmem:[#allocation7 + $0xb8] sm:$0xff]
        %v805 = vld [vmem:[#allocation7 + $0xc0] sm:$0xff]
        %v806 = vld [vmem:[#allocation7 + $0xc8] sm:$0xff]
        %v807 = vld [vmem:[#allocation7 + $0xd0] sm:$0xff]
        %v808 = vld [vmem:[#allocation7 + $0xd8] sm:$0xff]
        %v809 = vld [vmem:[#allocation7 + $0xe0] sm:$0xff]
        %v810 = vld [vmem:[#allocation7 + $0xe8] sm:$0xff]
        %v811 = vld [vmem:[#allocation7 + $0xf0] sm:$0xff]
        %v812 = vld [vmem:[#allocation7 + $0xf8] sm:$0xff]
        %v813 = vld [vmem:[#allocation7 + $0x100] sm:$0xff]
        %v814 = vld [vmem:[#allocation7 + $0x108] sm:$0xff]
        %v815 = vld [vmem:[#allocation7 + $0x110] sm:$0xff]
        %v816 = vld [vmem:[#allocation7 + $0x118] sm:$0xff]
        %v817 = vld [vmem:[#allocation7 + $0x120] sm:$0xff]
        %v818 = vld [vmem:[#allocation7 + $0x128] sm:$0xff]
        %v819 = vld [vmem:[#allocation7 + $0x130] sm:$0xff]
        %v820 = vld [vmem:[#allocation7 + $0x138] sm:$0xff]
        %v821 = vld [vmem:[#allocation7 + $0x140] sm:$0xff]
        %v822 = vld [vmem:[#allocation7 + $0x148] sm:$0xff]
        %v823 = vld [vmem:[#allocation7 + $0x150] sm:$0xff]
        %v824 = vld [vmem:[#allocation7 + $0x158] sm:$0xff]
        %v825 = vld [vmem:[#allocation7 + $0x160] sm:$0xff]
        %v826 = vld [vmem:[#allocation7 + $0x168] sm:$0xff]
        %v827 = vld [vmem:[#allocation7 + $0x170] sm:$0xff]
        %v828 = vld [vmem:[#allocation7 + $0x178] sm:$0xff]
        %v829 = vld [vmem:[#allocation7 + $0x180] sm:$0xff]
        %v830 = vld [vmem:[#allocation7 + $0x188] sm:$0xff]
        %v831 = vld [vmem:[#allocation7 + $0x190] sm:$0xff]
        %v832 = vld [vmem:[#allocation7 + $0x198] sm:$0xff]
        %v833 = vld [vmem:[#allocation7 + $0x1a0] sm:$0xff]
        %v834 = vld [vmem:[#allocation7 + $0x1a8] sm:$0xff]
        %v835 = vld [vmem:[#allocation7 + $0x1b0] sm:$0xff]
        %v836 = vld [vmem:[#allocation7 + $0x1b8] sm:$0xff]
        %v837 = vld [vmem:[#allocation7 + $0x1c0] sm:$0xff]
        %v838 = vld [vmem:[#allocation7 + $0x1c8] sm:$0xff]
        %v839 = vld [vmem:[#allocation7 + $0x1d0] sm:$0xff]
        %v840 = vld [vmem:[#allocation7 + $0x1d8] sm:$0xff]
        %v841 = vld [vmem:[#allocation7 + $0x1e0] sm:$0xff]
        %v842 = vld [vmem:[#allocation7 + $0x1e8] sm:$0xff]
        %v843 = vld [vmem:[#allocation7 + $0x1f0] sm:$0xff]
        %v844 = vld [vmem:[#allocation7 + $0x1f8] sm:$0xff]
        %v845 = vld [vmem:[%s4] sm:$0x1]
        %v847 = vlaneseq
        %v848 = vshrl.u32 %v847, 7
        %v849 = vsub.s32 0, %v848
        %v850 = vrot.slane %v845, %v849
        %852 = vmatprep.subr.mxu0 0.0
        %853 = vmatpush1.msra.mxu0 %v781
        %854 = vmatprep.subr.mxu0 0.0
        %855 = vmatpush1.msra.mxu0 %v782
        %856 = vmatprep.subr.mxu0 0.0
        %857 = vmatpush1.msra.mxu0 %v783
        %858 = vmatprep.subr.mxu0 0.0
        %859 = vmatpush1.msra.mxu0 %v784
        %860 = vmatprep.subr.mxu0 0.0
        %861 = vmatpush1.msra.mxu0 %v785
        %862 = vmatprep.subr.mxu0 0.0
        %863 = vmatpush1.msra.mxu0 %v786
        %864 = vmatprep.subr.mxu0 0.0
        %865 = vmatpush1.msra.mxu0 %v787
        %866 = vmatprep.subr.mxu0 0.0
        %867 = vmatpush1.msra.mxu0 %v788
        %868 = vmatprep.subr.mxu0 0.0
        %869 = vmatpush1.msra.mxu0 %v789
        %870 = vmatprep.subr.mxu0 0.0
        %871 = vmatpush1.msra.mxu0 %v790
        %872 = vmatprep.subr.mxu0 0.0
        %873 = vmatpush1.msra.mxu0 %v791
        %874 = vmatprep.subr.mxu0 0.0
        %875 = vmatpush1.msra.mxu0 %v792
        %876 = vmatprep.subr.mxu0 0.0
        %877 = vmatpush1.msra.mxu0 %v793
        %878 = vmatprep.subr.mxu0 0.0
        %879 = vmatpush1.msra.mxu0 %v794
        %880 = vmatprep.subr.mxu0 0.0
        %881 = vmatpush1.msra.mxu0 %v795
        %882 = vmatprep.subr.mxu0 0.0
        %883 = vmatpush1.msra.mxu0 %v796
        %884 = vmatprep.subr.mxu0 0.0
        %885 = vmatpush1.msra.mxu0 %v797
        %886 = vmatprep.subr.mxu0 0.0
        %887 = vmatpush1.msra.mxu0 %v798
        %888 = vmatprep.subr.mxu0 0.0
        %889 = vmatpush1.msra.mxu0 %v799
        %890 = vmatprep.subr.mxu0 0.0
        %891 = vmatpush1.msra.mxu0 %v800
        %892 = vmatprep.subr.mxu0 0.0
        %893 = vmatpush1.msra.mxu0 %v801
        %894 = vmatprep.subr.mxu0 0.0
        %895 = vmatpush1.msra.mxu0 %v802
        %896 = vmatprep.subr.mxu0 0.0
        %897 = vmatpush1.msra.mxu0 %v803
        %898 = vmatprep.subr.mxu0 0.0
        %899 = vmatpush1.msra.mxu0 %v804
        %900 = vmatprep.subr.mxu0 0.0
        %901 = vmatpush1.msra.mxu0 %v805
        %902 = vmatprep.subr.mxu0 0.0
        %903 = vmatpush1.msra.mxu0 %v806
        %904 = vmatprep.subr.mxu0 0.0
        %905 = vmatpush1.msra.mxu0 %v807
        %906 = vmatprep.subr.mxu0 0.0
        %907 = vmatpush1.msra.mxu0 %v808
        %908 = vmatprep.subr.mxu0 0.0
        %909 = vmatpush1.msra.mxu0 %v809
        %910 = vmatprep.subr.mxu0 0.0
        %911 = vmatpush1.msra.mxu0 %v810
        %912 = vmatprep.subr.mxu0 0.0
        %913 = vmatpush1.msra.mxu0 %v811
        %914 = vmatprep.subr.mxu0 0.0
        %915 = vmatpush1.msra.mxu0 %v812
        %916 = vmatprep.mubr.f32.mxu0 %v774
        %917 = vmatmul.mubr.f32.gmra.mrb[0].mxu0 %v773
        %v918 = vpop.f32.mrb[0].mxu0
        %v919 = vadd.f32 %v850, %v918
        %v920 = vpop.f32.mrb[0].mxu0
        %921 = vmatprep.mubr.f32.mxu0 %v778
        %922 = vmatmul.mubr.f32.gmra.mrb[0].mxu0 %v777
        %v923 = vpop.f32.mrb[0].mxu0
        %v924 = vadd.f32 %v850, %v923
        %v925 = vpop.f32.mrb[0].mxu0
        %926 = vdwg.mxu0
        %927 = vmatprep.subr.mxu0 0.0
        %928 = vmatpush1.msra.mxu0 %v813
        %929 = vmatprep.subr.mxu0 0.0
        %930 = vmatpush1.msra.mxu0 %v814
        %931 = vmatprep.subr.mxu0 0.0
        %932 = vmatpush1.msra.mxu0 %v815
        %933 = vmatprep.subr.mxu0 0.0
        %934 = vmatpush1.msra.mxu0 %v816
        %935 = vmatprep.subr.mxu0 0.0
        %936 = vmatpush1.msra.mxu0 %v817
        %937 = vmatprep.subr.mxu0 0.0
        %938 = vmatpush1.msra.mxu0 %v818
        %939 = vmatprep.subr.mxu0 0.0
        %940 = vmatpush1.msra.mxu0 %v819
        %941 = vmatprep.subr.mxu0 0.0
        %942 = vmatpush1.msra.mxu0 %v820
        %943 = vmatprep.subr.mxu0 0.0
        %944 = vmatpush1.msra.mxu0 %v821
        %945 = vmatprep.subr.mxu0 0.0
        %946 = vmatpush1.msra.mxu0 %v822
        %947 = vmatprep.subr.mxu0 0.0
        %948 = vmatpush1.msra.mxu0 %v823
        %949 = vmatprep.subr.mxu0 0.0
        %950 = vmatpush1.msra.mxu0 %v824
        %951 = vmatprep.subr.mxu0 0.0
        %952 = vmatpush1.msra.mxu0 %v825
        %953 = vmatprep.subr.mxu0 0.0
        %954 = vmatpush1.msra.mxu0 %v826
        %955 = vmatprep.subr.mxu0 0.0
        %956 = vmatpush1.msra.mxu0 %v827
        %957 = vmatprep.subr.mxu0 0.0
        %958 = vmatpush1.msra.mxu0 %v828
        %959 = vmatprep.subr.mxu0 0.0
        %960 = vmatpush1.msra.mxu0 %v829
        %961 = vmatprep.subr.mxu0 0.0
        %962 = vmatpush1.msra.mxu0 %v830
        %963 = vmatprep.subr.mxu0 0.0
        %964 = vmatpush1.msra.mxu0 %v831
        %965 = vmatprep.subr.mxu0 0.0
        %966 = vmatpush1.msra.mxu0 %v832
        %967 = vmatprep.subr.mxu0 0.0
        %968 = vmatpush1.msra.mxu0 %v833
        %969 = vmatprep.subr.mxu0 0.0
        %970 = vmatpush1.msra.mxu0 %v834
        %971 = vmatprep.subr.mxu0 0.0
        %972 = vmatpush1.msra.mxu0 %v835
        %973 = vmatprep.subr.mxu0 0.0
        %974 = vmatpush1.msra.mxu0 %v836
        %975 = vmatprep.subr.mxu0 0.0
        %976 = vmatpush1.msra.mxu0 %v837
        %977 = vmatprep.subr.mxu0 0.0
        %978 = vmatpush1.msra.mxu0 %v838
        %979 = vmatprep.subr.mxu0 0.0
        %980 = vmatpush1.msra.mxu0 %v839
        %981 = vmatprep.subr.mxu0 0.0
        %982 = vmatpush1.msra.mxu0 %v840
        %983 = vmatprep.subr.mxu0 0.0
        %984 = vmatpush1.msra.mxu0 %v841
        %985 = vmatprep.subr.mxu0 0.0
        %986 = vmatpush1.msra.mxu0 %v842
        %987 = vmatprep.subr.mxu0 0.0
        %988 = vmatpush1.msra.mxu0 %v843
        %989 = vmatprep.subr.mxu0 0.0
        %990 = vmatpush1.msra.mxu0 %v844
        %991 = vmatprep.mubr.f32.mxu0 %v776
        %992 = vmatmul.mubr.f32.gmra.mrb[0].mxu0 %v775
        %v993 = vpop.f32.mrb[0].mxu0
        %v994 = vadd.f32 %v919, %v993
        %v995 = vpop.f32.mrb[0].mxu0
        %996 = vmatprep.mubr.f32.mxu0 %v780
        %997 = vmatmul.mubr.f32.gmra.mrb[0].mxu0 %v779
        %v998 = vpop.f32.mrb[0].mxu0
        %v999 = vadd.f32 %v924, %v998
        %v1000 = vpop.f32.mrb[0].mxu0
        %1001 = vdwg.mxu0
        %v1002 = vpack.c.bf16 %v999, %v994
        %v1004 = vunpack.c.l.b16 %v1002
        %v1005 = vunpack.c.h.b16 %v1002
        %v1006 = vpack.c.b16 %v1004, %v1004
        %v1007 = vpack.c.b16 %v1005, %v1005
        %1010 = vst [vmem:[%s272] sm:$0xf] %v1006
        %1011 = vst [vmem:[%s272 + $0x4] sm:$0xf] %v1007
        %s1012 = sand.u32 %s141, 1
        %s1013 = scalar_lea.sflag [#allocation4], %s1012
        %s1014 = sand.u32 %s141, 1
        %s1015 = smul.addr %s1014, 8
        %s1016 = scalar_lea.vmem [#allocation8], %s1015
        // Predicated region
        $region53: #{tpu_custom_call.1} parent=39 // pred_check
          %p1017 = pneg %p151
        $region54: #{tpu_custom_call.1} parent=39 // pred_check_branch
          %1019 = sbr.rel (%p1017) target = $region56
        $region55: #{tpu_custom_call.1} parent=39 // pred_region
          %s1020 = smul.u32 2, %s23
          %s1022 = ssub.s32 128, 128
          %1023 = vsyncadd %s1013, %s1022
          %s1024 = smul.addr %s1020, 64
          %s1025 = scalar_lea.hbm %s5, %s1024
          %s1026 = sshll.u32 %s1016, 4
          %s1027 = int_to_ptr.vmem [resolvable:$true] %s1026
          %1032 = dma.vmem_to_hbm [thread:$0]  %s1027, 128, %s1025, %s1013, 64, 64, 4
        $region56: #{tpu_custom_call.1} parent=39 // pred_fallthru
          _
      $region40: #{tpu_custom_call.1} parent=5 // pred_fallthru
        _
      %p1033 = scmp.le.s32.totalorder 2, %s18
      // Predicated region
      $region57: #{tpu_custom_call.1} parent=5 // pred_check
        %p1034 = pneg %p1033
      $region58: #{tpu_custom_call.1} parent=5 // pred_check_branch
        %1036 = sbr.rel (%p1034) target = $region60
      $region59: #{tpu_custom_call.1} parent=5 // pred_region
        %s1037 = ssub.s32 %s18, 2
        // Predicated region
        $region61: #{tpu_custom_call.1} parent=59 // pred_check
          %p1038 = pneg %p157
        $region62: #{tpu_custom_call.1} parent=59 // pred_check_branch
          %1040 = sbr.rel (%p1038) target = $region64
        $region63: #{tpu_custom_call.1} parent=59 // pred_region
          %s1041 = sand.u32 %s142, 1
          %s1042 = scalar_lea.sflag [#allocation4], %s1041
          %s1043 = sand.u32 %s142, 1
          %s1044 = smul.addr %s1043, 8
          %s1045 = scalar_lea.vmem [#allocation8], %s1044
          %1046 = dma.done %s1042, 128
        $region64: #{tpu_custom_call.1} parent=59 // pred_fallthru
          _
      $region60: #{tpu_custom_call.1} parent=5 // pred_fallthru
        _
    $region6: #{tpu_custom_call.1} parent=1 // loop_footer
      %s22 = sadd.s32 1, %s18
    $region7: #{tpu_custom_call.1} parent=1 // loop_footer_branch
      %17 = sbr.rel target = $region3
    $region8: #{tpu_custom_call.1} parent=1 // loop_exit
      _
    %1047 = vsyncpa [#allocation3], 1
    %s1048 = scalar_lea.sflag [#allocation3], 1
    %1049 = vsyncpa %s1048, 1
    %1050 = vsyncpa [#allocation6], 1
    %1051 = vsyncpa [#allocation4], 1
    %s1052 = scalar_lea.sflag [#allocation4], 1
    %1053 = vsyncpa %s1052, 1

</llo_original>
